<compile_context>
chip_gen: v5e
topology: v5e:2x2
jax: 0.10.0
libtpu: 0.0.40
codegen_flags: <defaults>
</compile_context>

<pallas_src>
import functools

import jax
import jax.numpy as jnp
from jax.experimental import pallas as pl
from jax.experimental.pallas import tpu as pltpu


# ----------------------------------------------------------------------------
# Pallas kernel: one batch element per grid step (channel-first, spatial on lanes)
# ----------------------------------------------------------------------------
def _decoder_kernel(x_ref, masks_ref, w1_ref, b1_ref, wbig_ref, b2_ref,
                    w3_ref, b3_ref, out_ref, *, width):
    # x_ref:    (1, Cin, H*W)
    # masks:    (3, H*W) f32 edge masks for the +1-col / +1-row / both shifts
    # w1_ref:   (Cmid, Cin)        b1: (Cmid, 1)     [conv1 bias + BN1 folded, scale in rows]
    # wbig_ref: (4*Cmid, 4*Cmid)   b2: (4*Cmid, 1)   [deconv taps+phases, BN2 folded]
    # w3_ref:   (4*Cout, 4*Cmid)   b3: (4*Cout, 1)   [block-diag 1x1, BN3 folded]
    # out_ref:  (1, 4*Cout, H*W)   row = (2*pr + pc)*Cout + c  (stride-2 phases)
    hw = x_ref.shape[2]
    w = width

    x = x_ref[0]                                                  # (Cin, HW)

    # --- stage 1: 1x1 conv + (folded) BN1 + ReLU -----------------------------
    a = jnp.dot(w1_ref[...], x, preferred_element_type=jnp.float32)
    a = jnp.maximum(a + b1_ref[...], 0.0)                         # (Cmid, HW)

    # --- shifted copies of `a` along the flattened spatial (lane) axis -------
    #   a01[:, i*W+j] = a[:, i*W+(j+1)]   (0 past the right edge)
    #   a10[:, i*W+j] = a[:, (i+1)*W+j]   (0 past the bottom edge)
    #   a11[:, i*W+j] = a[:, (i+1)*W+j+1] (0 past either edge)
    m = masks_ref[...]                                            # (3, HW)
    a01 = pltpu.roll(a, hw - 1, 1) * m[0:1]
    a10 = pltpu.roll(a, hw - w, 1) * m[1:2]
    a11 = pltpu.roll(a, hw - w - 1, 1) * m[2:3]
    a_aug = jnp.concatenate([a, a01, a10, a11], axis=0)           # (4*Cmid, HW)

    # --- stage 2: ConvTranspose2d (all 4 stride-2 phases in one matmul) ------
    ph = jnp.dot(wbig_ref[...], a_aug, preferred_element_type=jnp.float32)
    ph = jnp.maximum(ph + b2_ref[...], 0.0)                       # (4*Cmid, HW)

    # --- stage 3: 1x1 conv (block-diag over the 4 phases) + BN3 + ReLU -------
    o = jnp.dot(w3_ref[...], ph, preferred_element_type=jnp.float32)
    out_ref[0] = jnp.maximum(o + b3_ref[...], 0.0)                # (4*Cout, HW)


# ----------------------------------------------------------------------------
# Wrapper
# ----------------------------------------------------------------------------
def decoder_block_forward(x_nchw, kparams):
    N, Cin, H, W = x_nchw.shape
    w1s, b1, wbigs, b2, w3s, b3 = kparams
    Cout4 = w3s.shape[0]
    Cout = Cout4 // 4
    HW = H * W

    # metadata-only reshape: kernel consumes native NCHW data (no transpose pass)
    x = x_nchw.reshape(N, Cin, HW).astype(jnp.float32)

    # edge masks for the cyclic lane rotations (zero what wrapped around)
    idx = jnp.arange(HW, dtype=jnp.int32)
    col_ok = (idx % W != (W - 1)).astype(jnp.float32)
    row_ok = (idx // W != (H - 1)).astype(jnp.float32)
    masks = jnp.stack([col_ok, row_ok, col_ok * row_ok], axis=0)   # (3, HW)

    def full_spec(arr):
        nd = arr.ndim
        return pl.BlockSpec(arr.shape, lambda n, _nd=nd: (0,) * _nd)

    kernel = functools.partial(_decoder_kernel, width=W)

    out_flat = pl.pallas_call(
        kernel,
        out_shape=jax.ShapeDtypeStruct((N, Cout4, HW), jnp.float32),
        grid=(N,),
        in_specs=[
            pl.BlockSpec((1, Cin, HW), lambda n: (n, 0, 0)),
            full_spec(masks),
            full_spec(w1s), full_spec(b1),
            full_spec(wbigs), full_spec(b2),
            full_spec(w3s), full_spec(b3),
        ],
        out_specs=pl.BlockSpec((1, Cout4, HW), lambda n: (n, 0, 0)),
        compiler_params=pltpu.CompilerParams(
            dimension_semantics=("parallel",)),
    )(x, masks, w1s, b1, wbigs, b2, w3s, b3)

    # de-interleave stride-2 phases (small output, single transpose):
    #   out_flat[n, (2*pr+pc)*Cout + c, i*W + j] -> out[n, c, 2i+pr, 2j+pc]
    out = out_flat.reshape(N, 2, 2, Cout, H, W)
    out = jnp.transpose(out, (0, 3, 4, 1, 5, 2)).reshape(N, Cout, 2 * H, 2 * W)
    return out


# ----------------------------------------------------------------------------
# Deterministic parameter construction + folding (bias + eval-mode BN + fused weights)
# ----------------------------------------------------------------------------
def make_params(key, in_planes, n_filters):
    cmid = in_planes // 4
    ks = jax.random.split(key, 16)

    def nrm(k, shape, scale=0.2):
        return scale * jax.random.normal(k, shape, dtype=jnp.float32)

    def bn(k, c):
        k1, k2, k3, k4 = jax.random.split(k, 4)
        gamma = 1.0 + 0.1 * jax.random.normal(k1, (c,), dtype=jnp.float32)
        beta = 0.1 * jax.random.normal(k2, (c,), dtype=jnp.float32)
        mean = 0.1 * jax.random.normal(k3, (c,), dtype=jnp.float32)
        var = 0.5 + jax.random.uniform(k4, (c,), dtype=jnp.float32)
        return gamma, beta, mean, var

    p = {}
    p['w1'] = nrm(ks[0], (in_planes, cmid))            # (Cin, Cmid)
    p['b1'] = nrm(ks[1], (cmid,), 0.1)
    p['g1'], p['be1'], p['m1'], p['v1'] = bn(ks[2], cmid)

    p['wt'] = nrm(ks[3], (cmid, cmid, 3, 3))           # PyTorch ConvTranspose: (Cin, Cout, kH, kW)
    p['bt'] = nrm(ks[4], (cmid,), 0.1)
    p['g2'], p['be2'], p['m2'], p['v2'] = bn(ks[5], cmid)

    p['w3'] = nrm(ks[6], (cmid, n_filters))            # (Cmid, Cout)
    p['b3'] = nrm(ks[7], (n_filters,), 0.1)
    p['g3'], p['be3'], p['m3'], p['v3'] = bn(ks[8], n_filters)
    return p


def fold_params(p, eps=1e-5):
    def fold(bias, gamma, beta, mean, var):
        s = gamma / jnp.sqrt(var + eps)
        shift = (bias - mean) * s + beta
        return s[:, None], shift[:, None]              # column vectors (channel-first)

    s1, b1 = fold(p['b1'], p['g1'], p['be1'], p['m1'], p['v1'])
    s2, b2 = fold(p['bt'], p['g2'], p['be2'], p['m2'], p['v2'])
    s3, b3 = fold(p['b3'], p['g3'], p['be3'], p['m3'], p['v3'])

    # 1x1 conv #1: BN scale folded into the rows of the weight matrix
    w1s = s1 * p['w1'].T                               # (Cmid, Cin)

    # deconv weights -> (kH, kW, Cin_mid, Cout_mid), then fuse the 9 taps + the
    # stride-2 phase assembly into one (4*Cmid, 4*Cmid) block matrix.
    wt = jnp.transpose(p['wt'], (2, 3, 0, 1))
    cmid = wt.shape[2]
    Z = jnp.zeros((cmid, cmid), jnp.float32)
    T = lambda ky, kx: wt[ky, kx].T                    # (Cout_mid, Cin_mid)
    # rows: output phases (ee, eo, oe, oo); cols: input shifts (a00, a01, a10, a11)
    #   ee = a00@W11
    #   eo = a00@W12 + a01@W10
    #   oe = a00@W21 + a10@W01
    #   oo = a00@W22 + a01@W20 + a10@W02 + a11@W00
    wbig = jnp.block([
        [T(1, 1), Z,       Z,       Z      ],
        [T(1, 2), T(1, 0), Z,       Z      ],
        [T(2, 1), Z,       T(0, 1), Z      ],
        [T(2, 2), T(2, 0), T(0, 2), T(0, 0)],
    ])                                                 # (4*Cmid, 4*Cmid)
    s2t, b2t = jnp.tile(s2, (4, 1)), jnp.tile(b2, (4, 1))
    wbigs = s2t * wbig                                 # BN2 scale folded into rows

    w3big = jnp.kron(jnp.eye(4, dtype=jnp.float32), p['w3'].T)   # (4*Cout, 4*Cmid)
    s3t, b3t = jnp.tile(s3, (4, 1)), jnp.tile(b3, (4, 1))
    w3s = s3t * w3big                                  # BN3 scale folded into rows

    return (w1s, b1, wbigs, b2t, w3s, b3t)


# ----------------------------------------------------------------------------
# Pure-JAX reference (independent formulation via lax.conv_general_dilated)
# ----------------------------------------------------------------------------
def _bn_relu(x, gamma, beta, mean, var, eps=1e-5):
    inv = (gamma / jnp.sqrt(var + eps))[None, :, None, None]
    y = (x - mean[None, :, None, None]) * inv + beta[None, :, None, None]
    return jnp.maximum(y, 0.0)


def reference_forward(x_nchw, p):
    y = jnp.einsum('nihw,io->nohw', x_nchw, p['w1']) + p['b1'][None, :, None, None]
    y = _bn_relu(y, p['g1'], p['be1'], p['m1'], p['v1'])

    # ConvTranspose2d(k=3, stride=2, pad=1, out_pad=1) == dilated conv with flipped kernel
    w_flip = p['wt'][:, :, ::-1, ::-1]
    w_oihw = jnp.transpose(w_flip, (1, 0, 2, 3))
    y = jax.lax.conv_general_dilated(
        y, w_oihw, window_strides=(1, 1),
        padding=((1, 2), (1, 2)), lhs_dilation=(2, 2),
        dimension_numbers=('NCHW', 'OIHW', 'NCHW'))
    y = y + p['bt'][None, :, None, None]
    y = _bn_relu(y, p['g2'], p['be2'], p['m2'], p['v2'])

    y = jnp.einsum('nihw,io->nohw', y, p['w3']) + p['b3'][None, :, None, None]
    return _bn_relu(y, p['g3'], p['be3'], p['m3'], p['v3'])


# ----------------------------------------------------------------------------
if __name__ == "__main__":
    N, IN_PLANES, N_FILTERS, H, W = 2, 32, 16, 16, 16   # Cmid=8, 4*Cmid=32, 4*Cout=64

    key = jax.random.PRNGKey(0)
    kx, kp = jax.random.split(key)
    x = jax.random.normal(kx, (N, IN_PLANES, H, W), dtype=jnp.float32)

    params = make_params(kp, IN_PLANES, N_FILTERS)
    kparams = fold_params(params)

    out = decoder_block_forward(x, kparams)
    out = jax.block_until_ready(out)

    ref = jax.block_until_ready(reference_forward(x, params))

    assert out.shape == (N, N_FILTERS, 2 * H, 2 * W), out.shape
    assert jnp.allclose(out, ref, atol=1e-3, rtol=1e-3), \
        f"max abs err {jnp.max(jnp.abs(out - ref))}"

    print("KERNEL_OK")
</pallas_src>

<mosaic_0001>
module attributes {stable_mosaic.version = 11 : i64} {
  func.func @_decoder_kernel(%arg0: i32, %arg1: memref<1x32x256xf32, #tpu.memory_space<vmem>>, %arg2: memref<3x256xf32, #tpu.memory_space<vmem>>, %arg3: memref<8x32xf32, #tpu.memory_space<vmem>>, %arg4: memref<8x1xf32, #tpu.memory_space<vmem>>, %arg5: memref<32x32xf32, #tpu.memory_space<vmem>>, %arg6: memref<32x1xf32, #tpu.memory_space<vmem>>, %arg7: memref<64x32xf32, #tpu.memory_space<vmem>>, %arg8: memref<64x1xf32, #tpu.memory_space<vmem>>, %arg9: memref<1x64x256xf32, #tpu.memory_space<vmem>>) attributes {dimension_semantics = [#tpu.dimension_semantics<parallel>], iteration_bounds = array<i64: 2>, scalar_prefetch = 0 : i64, scratch_operands = 0 : i64, tpu.core_type = #tpu.core_type<tc>, window_params = [{transform_indices = @transform_0, window_bounds = array<i64: 1, 32, 256>}, {pipeline_mode = #tpu.pipeline_mode<synchronous>, transform_indices = @transform_1, window_bounds = array<i64: 3, 256>}, {pipeline_mode = #tpu.pipeline_mode<synchronous>, transform_indices = @transform_2, window_bounds = array<i64: 8, 32>}, {pipeline_mode = #tpu.pipeline_mode<synchronous>, transform_indices = @transform_3, window_bounds = array<i64: 8, 1>}, {pipeline_mode = #tpu.pipeline_mode<synchronous>, transform_indices = @transform_4, window_bounds = array<i64: 32, 32>}, {pipeline_mode = #tpu.pipeline_mode<synchronous>, transform_indices = @transform_5, window_bounds = array<i64: 32, 1>}, {pipeline_mode = #tpu.pipeline_mode<synchronous>, transform_indices = @transform_6, window_bounds = array<i64: 64, 32>}, {pipeline_mode = #tpu.pipeline_mode<synchronous>, transform_indices = @transform_7, window_bounds = array<i64: 64, 1>}, {transform_indices = @transform_8, window_bounds = array<i64: 1, 64, 256>}]} {
    %c0 = arith.constant 0 : index
    %c0_0 = arith.constant 0 : index
    %c0_1 = arith.constant 0 : index
    %0 = vector.load %arg1[%c0, %c0_0, %c0_1] : memref<1x32x256xf32, #tpu.memory_space<vmem>>, vector<1x32x256xf32>
    %1 = vector.shape_cast %0 : vector<1x32x256xf32> to vector<32x256xf32>
    %c0_2 = arith.constant 0 : index
    %c0_3 = arith.constant 0 : index
    %2 = vector.load %arg3[%c0_2, %c0_3] : memref<8x32xf32, #tpu.memory_space<vmem>>, vector<8x32xf32>
    %cst = arith.constant dense<0.000000e+00> : vector<8x256xf32>
    %3 = tpu.matmul %2, %1, %cst {dimension_numbers = #tpu.dot_dimension_numbers<[1], [0], [0], [1], [0, 0, 1, 1], [], []>} : vector<8x32xf32>, vector<32x256xf32>, vector<8x256xf32> -> vector<8x256xf32>
    %c0_4 = arith.constant 0 : index
    %c0_5 = arith.constant 0 : index
    %4 = vector.load %arg4[%c0_4, %c0_5] : memref<8x1xf32, #tpu.memory_space<vmem>>, vector<8x1xf32>
    %5 = vector.broadcast %4 : vector<8x1xf32> to vector<8x256xf32>
    %6 = arith.addf %3, %5 : vector<8x256xf32>
    %cst_6 = arith.constant 0.000000e+00 : f32
    %7 = vector.broadcast %cst_6 : f32 to vector<8x256xf32>
    %8 = arith.maximumf %6, %7 : vector<8x256xf32>
    %c0_7 = arith.constant 0 : index
    %c0_8 = arith.constant 0 : index
    %9 = vector.load %arg2[%c0_7, %c0_8] : memref<3x256xf32, #tpu.memory_space<vmem>>, vector<3x256xf32>
    %c255_i32 = arith.constant 255 : i32
    %10 = tpu.dynamic_rotate %8 by %c255_i32 dim 1 : vector<8x256xf32>, i32 -> vector<8x256xf32>
    %11 = vector.extract_strided_slice %9 {offsets = [0, 0], sizes = [1, 256], strides = [1, 1]} : vector<3x256xf32> to vector<1x256xf32>
    %12 = vector.broadcast %11 : vector<1x256xf32> to vector<8x256xf32>
    %13 = arith.mulf %10, %12 : vector<8x256xf32>
    %c240_i32 = arith.constant 240 : i32
    %14 = tpu.dynamic_rotate %8 by %c240_i32 dim 1 : vector<8x256xf32>, i32 -> vector<8x256xf32>
    %15 = vector.extract_strided_slice %9 {offsets = [1, 0], sizes = [1, 256], strides = [1, 1]} : vector<3x256xf32> to vector<1x256xf32>
    %16 = vector.broadcast %15 : vector<1x256xf32> to vector<8x256xf32>
    %17 = arith.mulf %14, %16 : vector<8x256xf32>
    %c239_i32 = arith.constant 239 : i32
    %18 = tpu.dynamic_rotate %8 by %c239_i32 dim 1 : vector<8x256xf32>, i32 -> vector<8x256xf32>
    %19 = vector.extract_strided_slice %9 {offsets = [2, 0], sizes = [1, 256], strides = [1, 1]} : vector<3x256xf32> to vector<1x256xf32>
    %20 = vector.broadcast %19 : vector<1x256xf32> to vector<8x256xf32>
    %21 = arith.mulf %18, %20 : vector<8x256xf32>
    %22 = tpu.concatenate %8, %13, %17, %21 in 0 : vector<8x256xf32>, vector<8x256xf32>, vector<8x256xf32>, vector<8x256xf32> -> vector<32x256xf32>
    %c0_9 = arith.constant 0 : index
    %c0_10 = arith.constant 0 : index
    %23 = vector.load %arg5[%c0_9, %c0_10] : memref<32x32xf32, #tpu.memory_space<vmem>>, vector<32x32xf32>
    %cst_11 = arith.constant dense<0.000000e+00> : vector<32x256xf32>
    %24 = tpu.matmul %23, %22, %cst_11 {dimension_numbers = #tpu.dot_dimension_numbers<[1], [0], [0], [1], [0, 0, 1, 1], [], []>} : vector<32x32xf32>, vector<32x256xf32>, vector<32x256xf32> -> vector<32x256xf32>
    %c0_12 = arith.constant 0 : index
    %c0_13 = arith.constant 0 : index
    %25 = vector.load %arg6[%c0_12, %c0_13] : memref<32x1xf32, #tpu.memory_space<vmem>>, vector<32x1xf32>
    %26 = vector.broadcast %25 : vector<32x1xf32> to vector<32x256xf32>
    %27 = arith.addf %24, %26 : vector<32x256xf32>
    %cst_14 = arith.constant 0.000000e+00 : f32
    %28 = vector.broadcast %cst_14 : f32 to vector<32x256xf32>
    %29 = arith.maximumf %27, %28 : vector<32x256xf32>
    %c0_15 = arith.constant 0 : index
    %c0_16 = arith.constant 0 : index
    %30 = vector.load %arg7[%c0_15, %c0_16] : memref<64x32xf32, #tpu.memory_space<vmem>>, vector<64x32xf32>
    %cst_17 = arith.constant dense<0.000000e+00> : vector<64x256xf32>
    %31 = tpu.matmul %30, %29, %cst_17 {dimension_numbers = #tpu.dot_dimension_numbers<[1], [0], [0], [1], [0, 0, 1, 1], [], []>} : vector<64x32xf32>, vector<32x256xf32>, vector<64x256xf32> -> vector<64x256xf32>
    %c0_18 = arith.constant 0 : index
    %c0_19 = arith.constant 0 : index
    %32 = vector.load %arg8[%c0_18, %c0_19] : memref<64x1xf32, #tpu.memory_space<vmem>>, vector<64x1xf32>
    %33 = vector.broadcast %32 : vector<64x1xf32> to vector<64x256xf32>
    %34 = arith.addf %31, %33 : vector<64x256xf32>
    %cst_20 = arith.constant 0.000000e+00 : f32
    %35 = vector.broadcast %cst_20 : f32 to vector<64x256xf32>
    %36 = arith.maximumf %34, %35 : vector<64x256xf32>
    %c0_21 = arith.constant 0 : index
    %c0_22 = arith.constant 0 : index
    %c0_23 = arith.constant 0 : index
    %37 = vector.load %arg9[%c0_21, %c0_22, %c0_23] : memref<1x64x256xf32, #tpu.memory_space<vmem>>, vector<1x64x256xf32>
    %38 = vector.shape_cast %37 : vector<1x64x256xf32> to vector<64x256xf32>
    %39 = vector.shape_cast %36 : vector<64x256xf32> to vector<1x64x256xf32>
    tpu.vector_store %arg9[%c0_21, %c0_22, %c0_23], %39 {strides = array<i32>} : memref<1x64x256xf32, #tpu.memory_space<vmem>>, vector<1x64x256xf32>,
    return
  }
  func.func @transform_0(%arg0: i32) -> (i32, i32, i32) {
    %c0_i32 = arith.constant 0 : i32
    %c0_i32_0 = arith.constant 0 : i32
    %c0_i32_1 = arith.constant 0 : i32
    return %arg0, %c0_i32, %c0_i32_0 : i32, i32, i32
  }
  func.func @transform_1(%arg0: i32) -> (i32, i32) {
    %c0_i32 = arith.constant 0 : i32
    %c0_i32_0 = arith.constant 0 : i32
    %c0_i32_1 = arith.constant 0 : i32
    return %c0_i32, %c0_i32_0 : i32, i32
  }
  func.func @transform_2(%arg0: i32) -> (i32, i32) {
    %c0_i32 = arith.constant 0 : i32
    %c0_i32_0 = arith.constant 0 : i32
    %c0_i32_1 = arith.constant 0 : i32
    return %c0_i32, %c0_i32_0 : i32, i32
  }
  func.func @transform_3(%arg0: i32) -> (i32, i32) {
    %c0_i32 = arith.constant 0 : i32
    %c0_i32_0 = arith.constant 0 : i32
    %c0_i32_1 = arith.constant 0 : i32
    return %c0_i32, %c0_i32_0 : i32, i32
  }
  func.func @transform_4(%arg0: i32) -> (i32, i32) {
    %c0_i32 = arith.constant 0 : i32
    %c0_i32_0 = arith.constant 0 : i32
    %c0_i32_1 = arith.constant 0 : i32
    return %c0_i32, %c0_i32_0 : i32, i32
  }
  func.func @transform_5(%arg0: i32) -> (i32, i32) {
    %c0_i32 = arith.constant 0 : i32
    %c0_i32_0 = arith.constant 0 : i32
    %c0_i32_1 = arith.constant 0 : i32
    return %c0_i32, %c0_i32_0 : i32, i32
  }
  func.func @transform_6(%arg0: i32) -> (i32, i32) {
    %c0_i32 = arith.constant 0 : i32
    %c0_i32_0 = arith.constant 0 : i32
    %c0_i32_1 = arith.constant 0 : i32
    return %c0_i32, %c0_i32_0 : i32, i32
  }
  func.func @transform_7(%arg0: i32) -> (i32, i32) {
    %c0_i32 = arith.constant 0 : i32
    %c0_i32_0 = arith.constant 0 : i32
    %c0_i32_1 = arith.constant 0 : i32
    return %c0_i32, %c0_i32_0 : i32, i32
  }
  func.func @transform_8(%arg0: i32) -> (i32, i32, i32) {
    %c0_i32 = arith.constant 0 : i32
    %c0_i32_0 = arith.constant 0 : i32
    %c0_i32_1 = arith.constant 0 : i32
    return %arg0, %c0_i32, %c0_i32_0 : i32, i32, i32
  }
}

</mosaic_0001>

<llo_original>
// kernel: tpu_custom_call.1
$region0: #{tpu_custom_call.1}
  #allocation0 [shape = 'u32[]', space=smem, size = 0x4, offset = 0x4, fixed_abs, tag = 'smem constant byte address 0x4 - core index']
  #allocation1 [shape = 'u32[72,128]{1,0:T(1,128)}', space=vmem, size = 0x9000, scoped, tag = 'internal scratch']
  %s0 = inlined_call_operand.vmem [shape: f32[2,32,256], index: 0, kind: input, shape index: {}]
  %s1 = inlined_call_operand.vmem [shape: f32[3,256], index: 1, kind: input, shape index: {}]
  %s2 = inlined_call_operand.hbm [shape: f32[8,32], index: 2, kind: input, shape index: {}]
  %s3 = inlined_call_operand.vmem [shape: f32[8,1], index: 3, kind: input, shape index: {}]
  %s4 = inlined_call_operand.vmem [shape: f32[32,32], index: 4, kind: input, shape index: {}]
  %s5 = inlined_call_operand.vmem [shape: f32[32,1], index: 5, kind: input, shape index: {}]
  %s6 = inlined_call_operand.vmem [shape: f32[64,32], index: 6, kind: input, shape index: {}]
  %s7 = inlined_call_operand.vmem [shape: f32[64,1], index: 7, kind: input, shape index: {}]
  %s8 = inlined_call_operand.hbm [shape: f32[2,64,256], index: 8, kind: output, shape index: {}]
  %s9 = sld [smem:[#allocation0]]
  $region69: #{tpu_custom_call.1} parent=0
    _
  %s11 = ssub.s32 1, %s9
  %s12 = scalar_select 0, %s11, %s9
  $region1: #{tpu_custom_call.1} parent=0
    #allocation2 [shape = 'u8[4096]{0}', space=vmem, size = 0x1000, scoped, tag = 'input window, operand 2, single buffered']
    #allocation3 [shape = 's32[2]{0}', space=sflag, size = 0x8, scoped, tag = 'scoped memory for tpu_custom_call.1']
    #allocation4 [shape = 's32[2]{0}', space=sflag, size = 0x8, scoped, tag = 'scoped memory for tpu_custom_call.1']
    #allocation5 [shape = 'u8[131072]{0}', space=vmem, size = 0x20000, scoped, tag = 'output window, operand 0']
    %13 = vsyncpa [#allocation3], 0
    %14 = vsyncpa [#allocation4], 0
    %s15 = scalar_lea.sflag [#allocation4], 1
    %16 = vsyncpa %s15, 0
    loop: start=0, step=1, limit=4
    $region2: #{tpu_custom_call.1} parent=1 // loop_pre_header
      _
    $region3: #{tpu_custom_call.1} parent=1 // loop_header
      %s18 = sphi 0, %s22
      %p19 = scmp.ge.s32.totalorder %s18, 4
      %s28 = sphi 0, %s30
      %s31 = sphi 0, %s28
      %s32 = sphi 0, %s31
      %s48 = sphi 0, %s32
      %s52 = sphi 0, %s52
      %s54 = sphi 0, %s52
      %s55 = sphi 0, %s54
      %s69 = sphi 0, %s55
      %s73 = sphi 0, %s73
      %s75 = sphi 0, %s73
      %s76 = sphi 0, %s75
      %s90 = sphi 0, %s76
      %s94 = sphi 0, %s94
      %s96 = sphi 0, %s94
      %s97 = sphi 0, %s96
      %s111 = sphi 0, %s97
      %s115 = sphi 0, %s115
      %s117 = sphi 0, %s115
      %s118 = sphi 0, %s117
      %s132 = sphi 0, %s118
      %s136 = sphi 0, %s136
      %s138 = sphi 0, %s136
      %s139 = sphi 0, %s138
      %s153 = sphi 0, %s139
      %s157 = sphi 0, %s157
      %s159 = sphi 0, %s157
      %s160 = sphi 0, %s159
      %s174 = sphi 0, %s160
      %s178 = sphi 0, %s178
      %s180 = sphi 0, %s178
      %s181 = sphi 0, %s180
      %s195 = sphi 0, %s181
      %s201 = sphi 0, %s203
      %s204 = sphi 0, %s201
      %s205 = sphi 0, %s204
      %s221 = sphi 0, %s205
    $region4: #{tpu_custom_call.1} parent=1 // loop_header_branch
      %21 = sbr.rel (%p19) target = $region8
    $region5: #{tpu_custom_call.1} parent=1 // loop_body
      %s23 = ssub.s32 %s18, 1
      %s24 = ssub.s32 %s18, 2
      %s25 = sadd.s32 %s18, 1
      %s26 = ssub.s32 %s18, %s25
      %p27 = scmp.eq.s32.totalorder %s26, 0
      %s29 = sadd.s32 %s28, 1
      %s30 = scalar_select %p27, %s28, %s29
      %p33 = pneg %p27
      %p34 = scmp.eq.s32.totalorder %s18, 1
      %p35 = por %p33, %p34
      %p36 = scmp.ne.s32.totalorder %s28, %s31
      %p37 = scmp.eq.s32.totalorder %s18, 0
      %p38 = por %p36, %p37
      %p39 = scmp.ne.s32.totalorder %s28, %s31
      %p40 = scmp.eq.s32.totalorder %s23, 1
      %p41 = por %p39, %p40
      %p42 = scmp.ne.s32.totalorder %s31, %s32
      %p43 = scmp.eq.s32.totalorder %s23, 0
      %p44 = por %p42, %p43
      %p45 = scmp.ne.s32.totalorder %s31, %s32
      %p46 = scmp.eq.s32.totalorder %s24, 1
      %p47 = por %p45, %p46
      %p49 = scmp.ne.s32.totalorder %s32, %s48
      %p50 = scmp.eq.s32.totalorder %s24, 0
      %p51 = por %p49, %p50
      %s53 = sadd.s32 %s52, 1
      %p56 = scmp.eq.s32.totalorder %s18, 1
      %p57 = scmp.ne.s32.totalorder %s52, %s54
      %p58 = scmp.eq.s32.totalorder %s18, 0
      %p59 = por %p57, %p58
      %p60 = scmp.ne.s32.totalorder %s52, %s54
      %p61 = scmp.eq.s32.totalorder %s23, 1
      %p62 = por %p60, %p61
      %p63 = scmp.ne.s32.totalorder %s54, %s55
      %p64 = scmp.eq.s32.totalorder %s23, 0
      %p65 = por %p63, %p64
      %p66 = scmp.ne.s32.totalorder %s54, %s55
      %p67 = scmp.eq.s32.totalorder %s24, 1
      %p68 = por %p66, %p67
      %p70 = scmp.ne.s32.totalorder %s55, %s69
      %p71 = scmp.eq.s32.totalorder %s24, 0
      %p72 = por %p70, %p71
      %s74 = sadd.s32 %s73, 1
      %p77 = scmp.eq.s32.totalorder %s18, 1
      %p78 = scmp.ne.s32.totalorder %s73, %s75
      %p79 = scmp.eq.s32.totalorder %s18, 0
      %p80 = por %p78, %p79
      %p81 = scmp.ne.s32.totalorder %s73, %s75
      %p82 = scmp.eq.s32.totalorder %s23, 1
      %p83 = por %p81, %p82
      %p84 = scmp.ne.s32.totalorder %s75, %s76
      %p85 = scmp.eq.s32.totalorder %s23, 0
      %p86 = por %p84, %p85
      %p87 = scmp.ne.s32.totalorder %s75, %s76
      %p88 = scmp.eq.s32.totalorder %s24, 1
      %p89 = por %p87, %p88
      %p91 = scmp.ne.s32.totalorder %s76, %s90
      %p92 = scmp.eq.s32.totalorder %s24, 0
      %p93 = por %p91, %p92
      %s95 = sadd.s32 %s94, 1
      %p98 = scmp.eq.s32.totalorder %s18, 1
      %p99 = scmp.ne.s32.totalorder %s94, %s96
      %p100 = scmp.eq.s32.totalorder %s18, 0
      %p101 = por %p99, %p100
      %p102 = scmp.ne.s32.totalorder %s94, %s96
      %p103 = scmp.eq.s32.totalorder %s23, 1
      %p104 = por %p102, %p103
      %p105 = scmp.ne.s32.totalorder %s96, %s97
      %p106 = scmp.eq.s32.totalorder %s23, 0
      %p107 = por %p105, %p106
      %p108 = scmp.ne.s32.totalorder %s96, %s97
      %p109 = scmp.eq.s32.totalorder %s24, 1
      %p110 = por %p108, %p109
      %p112 = scmp.ne.s32.totalorder %s97, %s111
      %p113 = scmp.eq.s32.totalorder %s24, 0
      %p114 = por %p112, %p113
      %s116 = sadd.s32 %s115, 1
      %p119 = scmp.eq.s32.totalorder %s18, 1
      %p120 = scmp.ne.s32.totalorder %s115, %s117
      %p121 = scmp.eq.s32.totalorder %s18, 0
      %p122 = por %p120, %p121
      %p123 = scmp.ne.s32.totalorder %s115, %s117
      %p124 = scmp.eq.s32.totalorder %s23, 1
      %p125 = por %p123, %p124
      %p126 = scmp.ne.s32.totalorder %s117, %s118
      %p127 = scmp.eq.s32.totalorder %s23, 0
      %p128 = por %p126, %p127
      %p129 = scmp.ne.s32.totalorder %s117, %s118
      %p130 = scmp.eq.s32.totalorder %s24, 1
      %p131 = por %p129, %p130
      %p133 = scmp.ne.s32.totalorder %s118, %s132
      %p134 = scmp.eq.s32.totalorder %s24, 0
      %p135 = por %p133, %p134
      %s137 = sadd.s32 %s136, 1
      %p140 = scmp.eq.s32.totalorder %s18, 1
      %p141 = scmp.ne.s32.totalorder %s136, %s138
      %p142 = scmp.eq.s32.totalorder %s18, 0
      %p143 = por %p141, %p142
      %p144 = scmp.ne.s32.totalorder %s136, %s138
      %p145 = scmp.eq.s32.totalorder %s23, 1
      %p146 = por %p144, %p145
      %p147 = scmp.ne.s32.totalorder %s138, %s139
      %p148 = scmp.eq.s32.totalorder %s23, 0
      %p149 = por %p147, %p148
      %p150 = scmp.ne.s32.totalorder %s138, %s139
      %p151 = scmp.eq.s32.totalorder %s24, 1
      %p152 = por %p150, %p151
      %p154 = scmp.ne.s32.totalorder %s139, %s153
      %p155 = scmp.eq.s32.totalorder %s24, 0
      %p156 = por %p154, %p155
      %s158 = sadd.s32 %s157, 1
      %p161 = scmp.eq.s32.totalorder %s18, 1
      %p162 = scmp.ne.s32.totalorder %s157, %s159
      %p163 = scmp.eq.s32.totalorder %s18, 0
      %p164 = por %p162, %p163
      %p165 = scmp.ne.s32.totalorder %s157, %s159
      %p166 = scmp.eq.s32.totalorder %s23, 1
      %p167 = por %p165, %p166
      %p168 = scmp.ne.s32.totalorder %s159, %s160
      %p169 = scmp.eq.s32.totalorder %s23, 0
      %p170 = por %p168, %p169
      %p171 = scmp.ne.s32.totalorder %s159, %s160
      %p172 = scmp.eq.s32.totalorder %s24, 1
      %p173 = por %p171, %p172
      %p175 = scmp.ne.s32.totalorder %s160, %s174
      %p176 = scmp.eq.s32.totalorder %s24, 0
      %p177 = por %p175, %p176
      %s179 = sadd.s32 %s178, 1
      %p182 = scmp.eq.s32.totalorder %s18, 1
      %p183 = scmp.ne.s32.totalorder %s178, %s180
      %p184 = scmp.eq.s32.totalorder %s18, 0
      %p185 = por %p183, %p184
      %p186 = scmp.ne.s32.totalorder %s178, %s180
      %p187 = scmp.eq.s32.totalorder %s23, 1
      %p188 = por %p186, %p187
      %p189 = scmp.ne.s32.totalorder %s180, %s181
      %p190 = scmp.eq.s32.totalorder %s23, 0
      %p191 = por %p189, %p190
      %p192 = scmp.ne.s32.totalorder %s180, %s181
      %p193 = scmp.eq.s32.totalorder %s24, 1
      %p194 = por %p192, %p193
      %p196 = scmp.ne.s32.totalorder %s181, %s195
      %p197 = scmp.eq.s32.totalorder %s24, 0
      %p198 = por %p196, %p197
      %s199 = ssub.s32 %s18, %s25
      %p200 = scmp.eq.s32.totalorder %s199, 0
      %s202 = sadd.s32 %s201, 1
      %s203 = scalar_select %p200, %s201, %s202
      %p206 = pneg %p200
      %p207 = scmp.eq.s32.totalorder %s18, 1
      %p208 = por %p206, %p207
      %p209 = scmp.ne.s32.totalorder %s201, %s204
      %p210 = scmp.eq.s32.totalorder %s18, 0
      %p211 = por %p209, %p210
      %p212 = scmp.ne.s32.totalorder %s201, %s204
      %p213 = scmp.eq.s32.totalorder %s23, 1
      %p214 = por %p212, %p213
      %p215 = scmp.ne.s32.totalorder %s204, %s205
      %p216 = scmp.eq.s32.totalorder %s23, 0
      %p217 = por %p215, %p216
      %p218 = scmp.ne.s32.totalorder %s204, %s205
      %p219 = scmp.eq.s32.totalorder %s24, 1
      %p220 = por %p218, %p219
      %p222 = scmp.ne.s32.totalorder %s205, %s221
      %p223 = scmp.eq.s32.totalorder %s24, 0
      %p224 = por %p222, %p223
      %p225 = scmp.le.s32.totalorder 1, %s18
      %p226 = scmp.lt.s32.totalorder %s18, 3
      %p227 = pnand %p225, %p226
      %p228 = pneg %p227
      // Predicated region
      $region9: #{tpu_custom_call.1} parent=5 // pred_check
        _
      $region10: #{tpu_custom_call.1} parent=5 // pred_check_branch
        %230 = sbr.rel (%p227) target = $region12
      $region11: #{tpu_custom_call.1} parent=5 // pred_region
        %s231 = ssub.s32 %s18, 1
        // Predicated region
        $region13: #{tpu_custom_call.1} parent=11 // pred_check
          %p232 = pneg %p65
        $region14: #{tpu_custom_call.1} parent=11 // pred_check_branch
          %234 = sbr.rel (%p232) target = $region16
        $region15: #{tpu_custom_call.1} parent=11 // pred_region
          _
        $region16: #{tpu_custom_call.1} parent=11 // pred_fallthru
          _
        // Predicated region
        $region17: #{tpu_custom_call.1} parent=11 // pred_check
          %p235 = pneg %p86
        $region18: #{tpu_custom_call.1} parent=11 // pred_check_branch
          %237 = sbr.rel (%p235) target = $region20
        $region19: #{tpu_custom_call.1} parent=11 // pred_region
          %239 = vsyncadd [#allocation3], 0
          %s241 = sshll.u32 %s2, 4
          %s242 = int_to_ptr.hbm [resolvable:$true] %s241
          %s243 = sshll.u32 [#allocation2], 4
          %s244 = int_to_ptr.vmem [resolvable:$true] %s243
          %246 = dma.hbm_to_vmem [thread:$0]  %s242, 128, %s244, [#allocation3]
        $region20: #{tpu_custom_call.1} parent=11 // pred_fallthru
          _
        // Predicated region
        $region21: #{tpu_custom_call.1} parent=11 // pred_check
          %p247 = pneg %p107
        $region22: #{tpu_custom_call.1} parent=11 // pred_check_branch
          %249 = sbr.rel (%p247) target = $region24
        $region23: #{tpu_custom_call.1} parent=11 // pred_region
          _
        $region24: #{tpu_custom_call.1} parent=11 // pred_fallthru
          _
        // Predicated region
        $region25: #{tpu_custom_call.1} parent=11 // pred_check
          %p250 = pneg %p128
        $region26: #{tpu_custom_call.1} parent=11 // pred_check_branch
          %252 = sbr.rel (%p250) target = $region28
        $region27: #{tpu_custom_call.1} parent=11 // pred_region
          _
        $region28: #{tpu_custom_call.1} parent=11 // pred_fallthru
          _
        // Predicated region
        $region29: #{tpu_custom_call.1} parent=11 // pred_check
          %p253 = pneg %p149
        $region30: #{tpu_custom_call.1} parent=11 // pred_check_branch
          %255 = sbr.rel (%p253) target = $region32
        $region31: #{tpu_custom_call.1} parent=11 // pred_region
          _
        $region32: #{tpu_custom_call.1} parent=11 // pred_fallthru
          _
        // Predicated region
        $region33: #{tpu_custom_call.1} parent=11 // pred_check
          %p256 = pneg %p170
        $region34: #{tpu_custom_call.1} parent=11 // pred_check_branch
          %258 = sbr.rel (%p256) target = $region36
        $region35: #{tpu_custom_call.1} parent=11 // pred_region
          _
        $region36: #{tpu_custom_call.1} parent=11 // pred_fallthru
          _
        // Predicated region
        $region37: #{tpu_custom_call.1} parent=11 // pred_check
          %p259 = pneg %p191
        $region38: #{tpu_custom_call.1} parent=11 // pred_check_branch
          %261 = sbr.rel (%p259) target = $region40
        $region39: #{tpu_custom_call.1} parent=11 // pred_region
          _
        $region40: #{tpu_custom_call.1} parent=11 // pred_fallthru
          _
      $region12: #{tpu_custom_call.1} parent=5 // pred_fallthru
        _
      %p262 = scmp.lt.s32.totalorder %s18, 2
      // Predicated region
      $region41: #{tpu_custom_call.1} parent=5 // pred_check
        %p263 = pneg %p262
      $region42: #{tpu_custom_call.1} parent=5 // pred_check_branch
        %265 = sbr.rel (%p263) target = $region44
      $region43: #{tpu_custom_call.1} parent=5 // pred_region
        // Predicated region
        $region45: #{tpu_custom_call.1} parent=43 // pred_check
          %p266 = pneg %p38
        $region46: #{tpu_custom_call.1} parent=43 // pred_check_branch
          %268 = sbr.rel (%p266) target = $region48
        $region47: #{tpu_custom_call.1} parent=43 // pred_region
          %p269 = scmp.lt.s32.totalorder %s18, 1
          %s270 = scalar_select %p269, %s18, 1
          %s271 = smul.addr %s270, 8
          %s272 = smul.addr %s271, 8
          %s273 = scalar_lea.vmem %s0, %s272
        $region48: #{tpu_custom_call.1} parent=43 // pred_fallthru
          _
      $region44: #{tpu_custom_call.1} parent=5 // pred_fallthru
        _
      %p274 = scmp.le.s32.totalorder 1, %s18
      %p275 = scmp.lt.s32.totalorder %s18, 3
      %p276 = pnand %p274, %p275
      %p277 = pneg %p276
      // Predicated region
      $region49: #{tpu_custom_call.1} parent=5 // pred_check
        _
      $region50: #{tpu_custom_call.1} parent=5 // pred_check_branch
        %279 = sbr.rel (%p276) target = $region52
      $region51: #{tpu_custom_call.1} parent=5 // pred_region
        %s280 = ssub.s32 %s18, 1
        // Predicated region
        $region53: #{tpu_custom_call.1} parent=51 // pred_check
          %p281 = pneg %p86
        $region54: #{tpu_custom_call.1} parent=51 // pred_check_branch
          %283 = sbr.rel (%p281) target = $region56
        $region55: #{tpu_custom_call.1} parent=51 // pred_region
          %285 = dma.done [#allocation3], 128
        $region56: #{tpu_custom_call.1} parent=51 // pred_fallthru
          _
        %p286 = scmp.lt.s32.totalorder %s23, 1
        %s287 = scalar_select %p286, %s23, 1
        %s288 = smul.addr %s287, 8
        %s289 = smul.addr %s288, 8
        %s290 = scalar_lea.vmem %s0, %s289
        %p291 = pneg %p44
        %p292 = pneg %p41
        %p293 = pneg %p65
        %p294 = pneg %p62
        %p295 = pneg %p86
        %p296 = pneg %p83
        %p297 = pneg %p107
        %p298 = pneg %p104
        %p299 = pneg %p128
        %p300 = pneg %p125
        %p301 = pneg %p149
        %p302 = pneg %p146
        %p303 = pneg %p170
        %p304 = pneg %p167
        %p305 = pneg %p191
        %p306 = pneg %p188
        %p307 = pneg %p217
        %p308 = pneg %p214
        %s309 = sand.u32 %s204, 1
        %s310 = scalar_lea.sflag [#allocation4], %s309
        %s311 = sand.u32 %s204, 1
        %s312 = smul.addr %s311, 128
        %s313 = scalar_lea.vmem [#allocation5], %s312
        %p314 = scmp.lt.s32.totalorder %s23, 1
        %s315 = scalar_select %p314, %s23, 1
        %s316 = smul.addr %s315, 8
        %s317 = smul.addr %s316, 8
        %s318 = scalar_lea.vmem %s0, %s317
        %v319 = vld [vmem:[%s318] sm:$0xff]
        %v320 = vld [vmem:[%s318 + $0x8] sm:$0xff]
        %v321 = vld [vmem:[%s318 + $0x10] sm:$0xff]
        %v322 = vld [vmem:[%s318 + $0x18] sm:$0xff]
        %v323 = vld [vmem:[%s318 + $0x20] sm:$0xff]
        %v324 = vld [vmem:[%s318 + $0x28] sm:$0xff]
        %v325 = vld [vmem:[%s318 + $0x30] sm:$0xff]
        %v326 = vld [vmem:[%s318 + $0x38] sm:$0xff]
        %v327 = vld [vmem:[#allocation2] sm:$0xff]
        %v328 = vld [vmem:[%s3] sm:$0xff]
        %330 = vset.pattern.permute.xlu0 0
        %331 = vperm.xlu0 %330, %v328
        %v332 = vpop.permute.xlu0 %331
        %vm334 = vcmask 261120
        %v336 = vsel %vm334, %v327, 0
        %338 = vmatpush.msra.mxu0 0.0
        %339 = vmatpush.msra.mxu0 0.0
        %340 = vmatpush.msra.mxu0 0.0
        %341 = vmatpush.msra.mxu0 0.0
        %342 = vmatpush.msra.mxu0 0.0
        %343 = vmatpush.msra.mxu0 0.0
        %344 = vmatpush.msra.mxu0 0.0
        %345 = vmatpush.msra.mxu0 0.0
        %346 = vmatpush.msra.mxu0 0.0
        %347 = vmatpush.msra.mxu0 0.0
        %348 = vmatpush.msra.mxu0 0.0
        %349 = vmatpush.msra.mxu0 0.0
        %350 = vmatpush.msra.mxu0 %v325
        %351 = vmatpush.msra.mxu0 %v323
        %352 = vmatpush.msra.mxu0 %v321
        %353 = vmatpush.msra.mxu0 %v319
        %354 = vmatmul.f32.gmra.mxu0 %v336
        %v355 = vpop.f32.mrf.mxu0
        %v356 = vadd.f32 %v332, %v355
        %357 = vdwg.mxu0
        %358 = vmatpush.msra.mxu0 0.0
        %359 = vmatpush.msra.mxu0 0.0
        %360 = vmatpush.msra.mxu0 0.0
        %361 = vmatpush.msra.mxu0 0.0
        %362 = vmatpush.msra.mxu0 0.0
        %363 = vmatpush.msra.mxu0 0.0
        %364 = vmatpush.msra.mxu0 0.0
        %365 = vmatpush.msra.mxu0 0.0
        %366 = vmatpush.msra.mxu0 0.0
        %367 = vmatpush.msra.mxu0 0.0
        %368 = vmatpush.msra.mxu0 0.0
        %369 = vmatpush.msra.mxu0 0.0
        %370 = vmatpush.msra.mxu0 %v326
        %371 = vmatpush.msra.mxu0 %v324
        %372 = vmatpush.msra.mxu0 %v322
        %373 = vmatpush.msra.mxu0 %v320
        %374 = vmatmul.f32.gmra.mxu0 %v336
        %v375 = vpop.f32.mrf.mxu0
        %v376 = vadd.f32 %v332, %v375
        %377 = vdwg.mxu0
        %v378 = vmax.f32 %v356, 0.0
        %v379 = vmax.f32 %v376, 0.0
        %v380 = vld [vmem:[%s1] sm:$0x77]
        %381 = vrot.lane.b32.xlu0 %v378, 127
        %v382 = vpop.permute.xlu0 %381
        %383 = vrot.lane.b32.xlu0 %v379, 127
        %v384 = vpop.permute.xlu0 %383
        %v385 = vlaneseq
        %v386 = vand.u32 %v385, 127
        %vm387 = vcmp.lt.s32.totalorder %v386, 127
        %v388 = vsel %vm387, %v382, %v384
        %v389 = vsel %vm387, %v384, %v382
        %v391 = vperm.slane %v380, 0
        %v392 = vperm.slane %v380, 4
        %v395 = vperm.slane %v391, 0
        %v396 = vperm.slane %v392, 0
        %v397 = vmul.f32 %v388, %v395
        %v398 = vmul.f32 %v389, %v396
        %399 = vrot.lane.b32.xlu0 %v378, 112
        %v400 = vpop.permute.xlu0 %399
        %401 = vrot.lane.b32.xlu0 %v379, 112
        %v402 = vpop.permute.xlu0 %401
        %vm403 = vcmp.lt.s32.totalorder %v386, 112
        %v404 = vsel %vm403, %v400, %v402
        %v405 = vsel %vm403, %v402, %v400
        %v406 = vperm.slane %v380, 1
        %v407 = vperm.slane %v380, 5
        %v410 = vperm.slane %v406, 1
        %v411 = vperm.slane %v407, 1
        %v412 = vmul.f32 %v404, %v410
        %v413 = vmul.f32 %v405, %v411
        %414 = vrot.lane.b32.xlu0 %v378, 111
        %v415 = vpop.permute.xlu0 %414
        %416 = vrot.lane.b32.xlu0 %v379, 111
        %v417 = vpop.permute.xlu0 %416
        %vm418 = vcmp.lt.s32.totalorder %v386, 111
        %v419 = vsel %vm418, %v415, %v417
        %v420 = vsel %vm418, %v417, %v415
        %v421 = vperm.slane %v380, 2
        %v422 = vperm.slane %v380, 6
        %v425 = vperm.slane %v421, 2
        %v426 = vperm.slane %v422, 2
        %v427 = vmul.f32 %v419, %v425
        %v428 = vmul.f32 %v420, %v426
        %v429 = vld [vmem:[%s4] sm:$0xff]
        %v430 = vld [vmem:[%s4 + $0x8] sm:$0xff]
        %v431 = vld [vmem:[%s4 + $0x10] sm:$0xff]
        %v432 = vld [vmem:[%s4 + $0x18] sm:$0xff]
        %v433 = vld [vmem:[%s5] sm:$0xff]
        %v434 = vld [vmem:[%s5 + $0x8] sm:$0xff]
        %v435 = vld [vmem:[%s5 + $0x10] sm:$0xff]
        %v436 = vld [vmem:[%s5 + $0x18] sm:$0xff]
        %438 = vset.pattern.permute.xlu0 0
        %439 = vperm.xlu0 %438, %v433
        %v440 = vpop.permute.xlu0 %439
        %443 = vset.pattern.permute.xlu0 0
        %444 = vperm.xlu0 %443, %v434
        %v445 = vpop.permute.xlu0 %444
        %448 = vset.pattern.permute.xlu0 0
        %449 = vperm.xlu0 %448, %v435
        %v450 = vpop.permute.xlu0 %449
        %453 = vset.pattern.permute.xlu0 0
        %454 = vperm.xlu0 %453, %v436
        %v455 = vpop.permute.xlu0 %454
        %v458 = vsel %vm334, %v429, 0
        %v461 = vsel %vm334, %v430, 0
        %v464 = vsel %vm334, %v431, 0
        %v467 = vsel %vm334, %v432, 0
        %469 = vmatpush.msra.mxu0 0.0
        %470 = vmatpush.msra.mxu0 0.0
        %471 = vmatpush.msra.mxu0 0.0
        %472 = vmatpush.msra.mxu0 0.0
        %473 = vmatpush.msra.mxu0 0.0
        %474 = vmatpush.msra.mxu0 0.0
        %475 = vmatpush.msra.mxu0 0.0
        %476 = vmatpush.msra.mxu0 0.0
        %477 = vmatpush.msra.mxu0 0.0
        %478 = vmatpush.msra.mxu0 0.0
        %479 = vmatpush.msra.mxu0 0.0
        %480 = vmatpush.msra.mxu0 0.0
        %481 = vmatpush.msra.mxu0 %v427
        %482 = vmatpush.msra.mxu0 %v412
        %483 = vmatpush.msra.mxu0 %v397
        %484 = vmatpush.msra.mxu0 %v378
        %485 = vmatmul.f32.gmra.mxu0 %v458
        %v486 = vpop.f32.mrf.mxu0
        %v487 = vadd.f32 %v440, %v486
        %488 = vmatmul.f32.gmra.mxu0 %v461
        %v489 = vpop.f32.mrf.mxu0
        %v490 = vadd.f32 %v445, %v489
        %491 = vmatmul.f32.gmra.mxu0 %v464
        %v492 = vpop.f32.mrf.mxu0
        %v493 = vadd.f32 %v450, %v492
        %494 = vmatmul.f32.gmra.mxu0 %v467
        %v495 = vpop.f32.mrf.mxu0
        %v496 = vadd.f32 %v455, %v495
        %497 = vdwg.mxu0
        %498 = vmatpush.msra.mxu0 0.0
        %499 = vmatpush.msra.mxu0 0.0
        %500 = vmatpush.msra.mxu0 0.0
        %501 = vmatpush.msra.mxu0 0.0
        %502 = vmatpush.msra.mxu0 0.0
        %503 = vmatpush.msra.mxu0 0.0
        %504 = vmatpush.msra.mxu0 0.0
        %505 = vmatpush.msra.mxu0 0.0
        %506 = vmatpush.msra.mxu0 0.0
        %507 = vmatpush.msra.mxu0 0.0
        %508 = vmatpush.msra.mxu0 0.0
        %509 = vmatpush.msra.mxu0 0.0
        %510 = vmatpush.msra.mxu0 %v428
        %511 = vmatpush.msra.mxu0 %v413
        %512 = vmatpush.msra.mxu0 %v398
        %513 = vmatpush.msra.mxu0 %v379
        %514 = vmatmul.f32.gmra.mxu0 %v458
        %v515 = vpop.f32.mrf.mxu0
        %v516 = vadd.f32 %v440, %v515
        %517 = vmatmul.f32.gmra.mxu0 %v461
        %v518 = vpop.f32.mrf.mxu0
        %v519 = vadd.f32 %v445, %v518
        %520 = vmatmul.f32.gmra.mxu0 %v464
        %v521 = vpop.f32.mrf.mxu0
        %v522 = vadd.f32 %v450, %v521
        %523 = vmatmul.f32.gmra.mxu0 %v467
        %v524 = vpop.f32.mrf.mxu0
        %v525 = vadd.f32 %v455, %v524
        %526 = vdwg.mxu0
        %v527 = vmax.f32 %v487, 0.0
        %v528 = vmax.f32 %v516, 0.0
        %v529 = vmax.f32 %v490, 0.0
        %v530 = vmax.f32 %v519, 0.0
        %v531 = vmax.f32 %v493, 0.0
        %v532 = vmax.f32 %v522, 0.0
        %v533 = vmax.f32 %v496, 0.0
        %v534 = vmax.f32 %v525, 0.0
        %v535 = vld [vmem:[%s6] sm:$0xff]
        %v536 = vld [vmem:[%s6 + $0x8] sm:$0xff]
        %v537 = vld [vmem:[%s6 + $0x10] sm:$0xff]
        %v538 = vld [vmem:[%s6 + $0x18] sm:$0xff]
        %v539 = vld [vmem:[%s6 + $0x20] sm:$0xff]
        %v540 = vld [vmem:[%s6 + $0x28] sm:$0xff]
        %v541 = vld [vmem:[%s6 + $0x30] sm:$0xff]
        %v542 = vld [vmem:[%s6 + $0x38] sm:$0xff]
        %v543 = vld [vmem:[%s7] sm:$0xff]
        %v544 = vld [vmem:[%s7 + $0x8] sm:$0xff]
        %v545 = vld [vmem:[%s7 + $0x10] sm:$0xff]
        %v546 = vld [vmem:[%s7 + $0x18] sm:$0xff]
        %v547 = vld [vmem:[%s7 + $0x20] sm:$0xff]
        %v548 = vld [vmem:[%s7 + $0x28] sm:$0xff]
        %v549 = vld [vmem:[%s7 + $0x30] sm:$0xff]
        %v550 = vld [vmem:[%s7 + $0x38] sm:$0xff]
        %552 = vset.pattern.permute.xlu0 0
        %553 = vperm.xlu0 %552, %v543
        %v554 = vpop.permute.xlu0 %553
        %557 = vset.pattern.permute.xlu0 0
        %558 = vperm.xlu0 %557, %v544
        %v559 = vpop.permute.xlu0 %558
        %562 = vset.pattern.permute.xlu0 0
        %563 = vperm.xlu0 %562, %v545
        %v564 = vpop.permute.xlu0 %563
        %567 = vset.pattern.permute.xlu0 0
        %568 = vperm.xlu0 %567, %v546
        %v569 = vpop.permute.xlu0 %568
        %572 = vset.pattern.permute.xlu0 0
        %573 = vperm.xlu0 %572, %v547
        %v574 = vpop.permute.xlu0 %573
        %577 = vset.pattern.permute.xlu0 0
        %578 = vperm.xlu0 %577, %v548
        %v579 = vpop.permute.xlu0 %578
        %582 = vset.pattern.permute.xlu0 0
        %583 = vperm.xlu0 %582, %v549
        %v584 = vpop.permute.xlu0 %583
        %587 = vset.pattern.permute.xlu0 0
        %588 = vperm.xlu0 %587, %v550
        %v589 = vpop.permute.xlu0 %588
        %v592 = vsel %vm334, %v535, 0
        %v595 = vsel %vm334, %v536, 0
        %v598 = vsel %vm334, %v537, 0
        %v601 = vsel %vm334, %v538, 0
        %v604 = vsel %vm334, %v539, 0
        %v607 = vsel %vm334, %v540, 0
        %v610 = vsel %vm334, %v541, 0
        %v613 = vsel %vm334, %v542, 0
        %615 = vmatpush.msra.mxu0 0.0
        %616 = vmatpush.msra.mxu0 0.0
        %617 = vmatpush.msra.mxu0 0.0
        %618 = vmatpush.msra.mxu0 0.0
        %619 = vmatpush.msra.mxu0 0.0
        %620 = vmatpush.msra.mxu0 0.0
        %621 = vmatpush.msra.mxu0 0.0
        %622 = vmatpush.msra.mxu0 0.0
        %623 = vmatpush.msra.mxu0 0.0
        %624 = vmatpush.msra.mxu0 0.0
        %625 = vmatpush.msra.mxu0 0.0
        %626 = vmatpush.msra.mxu0 0.0
        %627 = vmatpush.msra.mxu0 %v533
        %628 = vmatpush.msra.mxu0 %v531
        %629 = vmatpush.msra.mxu0 %v529
        %630 = vmatpush.msra.mxu0 %v527
        %631 = vmatmul.f32.gmra.mxu0 %v592
        %v632 = vpop.f32.mrf.mxu0
        %v633 = vadd.f32 %v554, %v632
        %634 = vmatmul.f32.gmra.mxu0 %v595
        %v635 = vpop.f32.mrf.mxu0
        %v636 = vadd.f32 %v559, %v635
        %637 = vmatmul.f32.gmra.mxu0 %v598
        %v638 = vpop.f32.mrf.mxu0
        %v639 = vadd.f32 %v564, %v638
        %640 = vmatmul.f32.gmra.mxu0 %v601
        %v641 = vpop.f32.mrf.mxu0
        %v642 = vadd.f32 %v569, %v641
        %643 = vmatmul.f32.gmra.mxu0 %v604
        %v644 = vpop.f32.mrf.mxu0
        %v645 = vadd.f32 %v574, %v644
        %646 = vmatmul.f32.gmra.mxu0 %v607
        %v647 = vpop.f32.mrf.mxu0
        %v648 = vadd.f32 %v579, %v647
        %649 = vmatmul.f32.gmra.mxu0 %v610
        %v650 = vpop.f32.mrf.mxu0
        %v651 = vadd.f32 %v584, %v650
        %652 = vmatmul.f32.gmra.mxu0 %v613
        %v653 = vpop.f32.mrf.mxu0
        %v654 = vadd.f32 %v589, %v653
        %655 = vdwg.mxu0
        %656 = vmatpush.msra.mxu0 0.0
        %657 = vmatpush.msra.mxu0 0.0
        %658 = vmatpush.msra.mxu0 0.0
        %659 = vmatpush.msra.mxu0 0.0
        %660 = vmatpush.msra.mxu0 0.0
        %661 = vmatpush.msra.mxu0 0.0
        %662 = vmatpush.msra.mxu0 0.0
        %663 = vmatpush.msra.mxu0 0.0
        %664 = vmatpush.msra.mxu0 0.0
        %665 = vmatpush.msra.mxu0 0.0
        %666 = vmatpush.msra.mxu0 0.0
        %667 = vmatpush.msra.mxu0 0.0
        %668 = vmatpush.msra.mxu0 %v534
        %669 = vmatpush.msra.mxu0 %v532
        %670 = vmatpush.msra.mxu0 %v530
        %671 = vmatpush.msra.mxu0 %v528
        %672 = vmatmul.f32.gmra.mxu0 %v592
        %v673 = vpop.f32.mrf.mxu0
        %v674 = vadd.f32 %v554, %v673
        %675 = vmatmul.f32.gmra.mxu0 %v595
        %v676 = vpop.f32.mrf.mxu0
        %v677 = vadd.f32 %v559, %v676
        %678 = vmatmul.f32.gmra.mxu0 %v598
        %v679 = vpop.f32.mrf.mxu0
        %v680 = vadd.f32 %v564, %v679
        %681 = vmatmul.f32.gmra.mxu0 %v601
        %v682 = vpop.f32.mrf.mxu0
        %v683 = vadd.f32 %v569, %v682
        %684 = vmatmul.f32.gmra.mxu0 %v604
        %v685 = vpop.f32.mrf.mxu0
        %v686 = vadd.f32 %v574, %v685
        %687 = vmatmul.f32.gmra.mxu0 %v607
        %v688 = vpop.f32.mrf.mxu0
        %v689 = vadd.f32 %v579, %v688
        %690 = vmatmul.f32.gmra.mxu0 %v610
        %v691 = vpop.f32.mrf.mxu0
        %v692 = vadd.f32 %v584, %v691
        %693 = vmatmul.f32.gmra.mxu0 %v613
        %v694 = vpop.f32.mrf.mxu0
        %v695 = vadd.f32 %v589, %v694
        %696 = vdwg.mxu0
        %v697 = vmax.f32 %v633, 0.0
        %v698 = vmax.f32 %v674, 0.0
        %v699 = vmax.f32 %v636, 0.0
        %v700 = vmax.f32 %v677, 0.0
        %v701 = vmax.f32 %v639, 0.0
        %v702 = vmax.f32 %v680, 0.0
        %v703 = vmax.f32 %v642, 0.0
        %v704 = vmax.f32 %v683, 0.0
        %v705 = vmax.f32 %v645, 0.0
        %v706 = vmax.f32 %v686, 0.0
        %v707 = vmax.f32 %v648, 0.0
        %v708 = vmax.f32 %v689, 0.0
        %v709 = vmax.f32 %v651, 0.0
        %v710 = vmax.f32 %v692, 0.0
        %v711 = vmax.f32 %v654, 0.0
        %v712 = vmax.f32 %v695, 0.0
        %713 = vst [vmem:[%s313] sm:$0xff] %v697
        %714 = vst [vmem:[%s313 + $0x8] sm:$0xff] %v698
        %715 = vst [vmem:[%s313 + $0x10] sm:$0xff] %v699
        %716 = vst [vmem:[%s313 + $0x18] sm:$0xff] %v700
        %717 = vst [vmem:[%s313 + $0x20] sm:$0xff] %v701
        %718 = vst [vmem:[%s313 + $0x28] sm:$0xff] %v702
        %719 = vst [vmem:[%s313 + $0x30] sm:$0xff] %v703
        %720 = vst [vmem:[%s313 + $0x38] sm:$0xff] %v704
        %721 = vst [vmem:[%s313 + $0x40] sm:$0xff] %v705
        %722 = vst [vmem:[%s313 + $0x48] sm:$0xff] %v706
        %723 = vst [vmem:[%s313 + $0x50] sm:$0xff] %v707
        %724 = vst [vmem:[%s313 + $0x58] sm:$0xff] %v708
        %725 = vst [vmem:[%s313 + $0x60] sm:$0xff] %v709
        %726 = vst [vmem:[%s313 + $0x68] sm:$0xff] %v710
        %727 = vst [vmem:[%s313 + $0x70] sm:$0xff] %v711
        %728 = vst [vmem:[%s313 + $0x78] sm:$0xff] %v712
        %s729 = sand.u32 %s204, 1
        %s730 = scalar_lea.sflag [#allocation4], %s729
        %s731 = sand.u32 %s204, 1
        %s732 = smul.addr %s731, 128
        %s733 = scalar_lea.vmem [#allocation5], %s732
        // Predicated region
        $region57: #{tpu_custom_call.1} parent=51 // pred_check
          %p734 = pneg %p214
        $region58: #{tpu_custom_call.1} parent=51 // pred_check_branch
          %736 = sbr.rel (%p734) target = $region60
        $region59: #{tpu_custom_call.1} parent=51 // pred_region
          %738 = vsyncadd %s730, 0
          %s739 = smul.addr %s23, 16
          %s740 = smul.addr %s739, 8
          %s741 = scalar_lea.hbm %s8, %s740
          %s742 = sshll.u32 %s733, 4
          %s743 = int_to_ptr.vmem [resolvable:$true] %s742
          %s744 = sshll.u32 %s741, 4
          %s745 = int_to_ptr.hbm [resolvable:$true] %s744
          %750 = dma.vmem_to_hbm [thread:$0]  %s743, 2048, %s745, %s730, 256, 256, 16
        $region60: #{tpu_custom_call.1} parent=51 // pred_fallthru
          _
      $region52: #{tpu_custom_call.1} parent=5 // pred_fallthru
        _
      %p751 = scmp.le.s32.totalorder 2, %s18
      // Predicated region
      $region61: #{tpu_custom_call.1} parent=5 // pred_check
        %p752 = pneg %p751
      $region62: #{tpu_custom_call.1} parent=5 // pred_check_branch
        %754 = sbr.rel (%p752) target = $region64
      $region63: #{tpu_custom_call.1} parent=5 // pred_region
        %s755 = ssub.s32 %s18, 2
        // Predicated region
        $region65: #{tpu_custom_call.1} parent=63 // pred_check
          %p756 = pneg %p220
        $region66: #{tpu_custom_call.1} parent=63 // pred_check_branch
          %758 = sbr.rel (%p756) target = $region68
        $region67: #{tpu_custom_call.1} parent=63 // pred_region
          %s759 = sand.u32 %s205, 1
          %s760 = scalar_lea.sflag [#allocation4], %s759
          %s761 = sand.u32 %s205, 1
          %s762 = smul.addr %s761, 128
          %s763 = scalar_lea.vmem [#allocation5], %s762
          %765 = dma.done %s760, 2048
        $region68: #{tpu_custom_call.1} parent=63 // pred_fallthru
          _
      $region64: #{tpu_custom_call.1} parent=5 // pred_fallthru
        _
    $region6: #{tpu_custom_call.1} parent=1 // loop_footer
      %s22 = sadd.s32 1, %s18
    $region7: #{tpu_custom_call.1} parent=1 // loop_footer_branch
      %17 = sbr.rel target = $region3
    $region8: #{tpu_custom_call.1} parent=1 // loop_exit
      _
    %766 = vsyncpa [#allocation3], 1
    %s767 = scalar_lea.sflag [#allocation3], 1
    %768 = vsyncpa %s767, 1
    %769 = vsyncpa [#allocation4], 1
    %s770 = scalar_lea.sflag [#allocation4], 1
    %771 = vsyncpa %s770, 1

</llo_original>
